<compile_context>
chip_gen: v6e
topology: v6e:2x2x1
jax: 0.10.0
libtpu: 0.0.40
codegen_flags: <defaults>
</compile_context>

<pallas_src>
import functools

import jax
import jax.numpy as jnp
from jax.experimental import pallas as pl
from jax.experimental.pallas import tpu as pltpu

_MiB = 1024 * 1024
_ROW_CANDS = (1024, 512, 256, 128, 64, 32, 16, 8)


def _round_up(x, m):
    return ((x + m - 1) // m) * m


def _vmem_capacity_bytes():
    """Per-core VMEM capacity; conservative (v7x-sized) fallback if unknown."""
    try:
        info = pltpu.get_tpu_info()
        for name in ("vmem_capacity_bytes", "vmem_bytes", "vmem_size_bytes"):
            v = getattr(info, name, None)
            if v:
                return int(v)
    except Exception:
        pass
    return 64 * _MiB


def _tile_budget_bytes(cap):
    # v7x-class (64 MiB / TC): keep tiles ~27 MiB; v5e/v6e (128 MiB): ~90 MiB.
    if cap <= 80 * _MiB:
        return int(cap * 0.42)
    return min(96 * _MiB, int(cap * 0.72))


def _vmem_bytes(block_rows, block_cols, hidden, itemsize, feature_tiled):
    # Double-buffered tiles + generous f32 intermediate margin
    # (z / gate / x1f / x2f / blend) so a tile picked right at the budget
    # does not trip the scoped VMEM limit at compile time.
    x1_t = 2 * block_rows * hidden * itemsize
    x2_t = 2 * block_rows * block_cols * itemsize
    out_t = 2 * block_rows * block_cols * itemsize
    w_t = 2 * hidden * block_cols * itemsize
    b_t = 2 * block_cols * 4
    tmp = 5 * block_rows * block_cols * 4
    if feature_tiled:
        tmp += block_rows * block_cols * itemsize   # in-kernel x1 column slice
    return x1_t + x2_t + out_t + w_t + b_t + tmp


def _pick_rows(N, row_start, fits):
    cands = [r for r in _ROW_CANDS if r <= row_start and r <= N]
    if not cands:
        cands = [N]                    # tiny N: one full-extent block
    for r in cands:
        if fits(r):
            return r, True
    return cands[-1], False


def _choose_tiling(N, H, itemsize, budget, cap):
    """Pick (block_rows, block_cols). Prefer block_cols == H so x1 and W are
    streamed from HBM exactly once; only fall back to feature tiling when the
    W tile itself cannot fit the per-generation VMEM budget."""
    row_start = 512 if cap <= 80 * _MiB else 1024

    # Path A: no feature tiling (preferred).
    br_a, fits_a = _pick_rows(
        N, row_start, lambda r: _vmem_bytes(r, H, H, itemsize, False) <= budget)
    if fits_a and br_a >= min(128, N):
        return br_a, H

    # Path B: feature tiling for very large H.
    if H > 128 and H % 128 == 0:
        for bc in (512, 256, 128):
            if bc < H and H % bc == 0:
                br_b, fits_b = _pick_rows(
                    N, row_start,
                    lambda r, bc=bc: _vmem_bytes(r, bc, H, itemsize, True) <= budget)
                if fits_b and br_b >= min(128, N):
                    return br_b, bc

    return br_a, H                      # best effort


def _highway_kernel(x1_ref, x2_ref, wt_ref, b_ref, o_ref, *,
                    block_cols, feature_tiled):
    # z = x1 @ W^T.  W was pre-transposed on the host, so this is a plain
    # [M,K]x[K,N] MXU matmul: native-dtype operands, f32 accumulation.
    z = jnp.dot(x1_ref[...], wt_ref[...], preferred_element_type=jnp.float32)
    gate = jax.nn.sigmoid(z + b_ref[...])          # bias is f32 (1, block_cols)

    if feature_tiled:
        # Gate/blend column tile sliced from the already-resident full-H x1
        # tile (128-lane-aligned dynamic slice; no duplicated input stream).
        j = pl.program_id(1)
        col = pl.multiple_of(j * block_cols, 128)
        x1c = x1_ref[:, pl.ds(col, block_cols)]
    else:
        x1c = x1_ref[...]

    x1f = x1c.astype(jnp.float32)
    x2f = x2_ref[...].astype(jnp.float32)
    # gate*x2 + (1-gate)*x1 == x1 + gate*(x2 - x1)
    o_ref[...] = (x1f + gate * (x2f - x1f)).astype(o_ref.dtype)


def highway(x1, x2, w, b, *, block_rows=None, block_cols=None):
    """Highway forward: sigmoid(x1 @ W^T + b) gating between x2 and x1.

    x1, x2 : [N, H]   (any float dtype; bf16 recommended for HBM bandwidth)
    w      : [H, H]   PyTorch nn.Linear weight, NOT transposed
    b      : [H]
    """
    N, H = x1.shape
    assert x2.shape == (N, H)
    assert w.shape == (H, H)
    assert b.shape == (H,)

    dtype = x1.dtype
    itemsize = jnp.dtype(dtype).itemsize
    # One-time host-side transpose: the kernel then never needs a per-step
    # XLU transpose of the W tile.
    wt = w.T.astype(dtype)                       # [H_in, H_out]
    b2 = b.reshape(1, H).astype(jnp.float32)

    cap = _vmem_capacity_bytes()
    budget = _tile_budget_bytes(cap)

    auto_br, auto_bc = _choose_tiling(N, H, itemsize, budget, cap)
    if block_cols is None:
        block_cols = auto_bc
    if block_rows is None:
        block_rows = auto_br
    block_rows = max(1, min(_round_up(block_rows, 8), N))
    assert block_cols == H or (H % block_cols == 0 and block_cols % 128 == 0), (
        "block_cols must equal H or be a 128-multiple that divides H")

    feature_tiled = block_cols < H
    n_row = pl.cdiv(N, block_rows)       # ragged N -> Pallas boundary masking
    n_col = H // block_cols

    kernel = functools.partial(
        _highway_kernel, block_cols=block_cols, feature_tiled=feature_tiled)

    if feature_tiled:
        # Rows OUTER (megacore-sharded, dominant stream), feature tiles INNER
        # so the full-H x1 tile's block index is constant along the inner loop
        # (its redundant DMA is skipped); only small W column tiles re-stream.
        grid = (n_row, n_col)
        in_specs = [
            pl.BlockSpec((block_rows, H), lambda i, j: (i, 0)),            # x1 (full H)
            pl.BlockSpec((block_rows, block_cols), lambda i, j: (i, j)),   # x2
            pl.BlockSpec((H, block_cols), lambda i, j: (0, j)),            # W^T tile
            pl.BlockSpec((1, block_cols), lambda i, j: (0, j)),            # bias
        ]
        out_spec = pl.BlockSpec((block_rows, block_cols), lambda i, j: (i, j))
        dim_sem = ("parallel", "arbitrary")   # shard rows across TCs, not features
    else:
        grid = (n_row,)
        in_specs = [
            pl.BlockSpec((block_rows, H), lambda i: (i, 0)),   # x1
            pl.BlockSpec((block_rows, H), lambda i: (i, 0)),   # x2
            pl.BlockSpec((H, H), lambda i: (0, 0)),            # W^T (loaded once)
            pl.BlockSpec((1, H), lambda i: (0, 0)),            # bias
        ]
        out_spec = pl.BlockSpec((block_rows, H), lambda i: (i, 0))
        dim_sem = ("parallel",)

    needed = _vmem_bytes(block_rows, block_cols, H, itemsize, feature_tiled)
    vmem_limit = int(min(cap, max(int(needed * 1.25) + 4 * _MiB, 32 * _MiB)))

    w_passes = n_row if feature_tiled else 1     # W re-streamed per row block if tiled
    cost = pl.CostEstimate(
        flops=2 * N * H * H + 6 * N * H,
        transcendentals=N * H,
        bytes_accessed=(3 * N * H * itemsize
                        + H * H * itemsize * w_passes
                        + H * 4 * w_passes),
    )

    return pl.pallas_call(
        kernel,
        out_shape=jax.ShapeDtypeStruct((N, H), dtype),
        grid_spec=pltpu.PrefetchScalarGridSpec(
            num_scalar_prefetch=0,
            grid=grid,
            in_specs=in_specs,
            out_specs=out_spec,
        ),
        compiler_params=pltpu.CompilerParams(
            dimension_semantics=dim_sem,
            vmem_limit_bytes=vmem_limit,
        ),
        cost_estimate=cost,
    )(x1, x2, wt, b2)


def highway_ref(x1, x2, w, b):
    gate = jax.nn.sigmoid(x1 @ w.T + b)
    return gate * x2 + (1.0 - gate) * x1


if __name__ == "__main__":
    key = jax.random.PRNGKey(0)
    k1, k2, k3, k4 = jax.random.split(key, 4)

    # --- small shapes consistent with the module (8 nodes, hidden = 32) ------
    N, H = 8, 32
    x1 = jax.random.normal(k1, (N, H), dtype=jnp.float32)
    x2 = jax.random.normal(k2, (N, H), dtype=jnp.float32)
    bound = 1.0 / (H ** 0.5)
    w = jax.random.uniform(k3, (H, H), dtype=jnp.float32, minval=-bound, maxval=bound)
    b = jax.random.uniform(k4, (H,), dtype=jnp.float32, minval=-bound, maxval=bound)

    out = jax.block_until_ready(highway(x1, x2, w, b))
    ref = highway_ref(x1, x2, w, b)
    assert out.shape == (N, H)
    assert jnp.allclose(out, ref, atol=1e-4, rtol=1e-4)

    # --- ragged N, auto tiling (block_cols == H preferred path) --------------
    N2, H2 = 203, 256
    k5, k6, k7, k8 = jax.random.split(jax.random.PRNGKey(1), 4)
    x1b = jax.random.normal(k5, (N2, H2), dtype=jnp.float32)
    x2b = jax.random.normal(k6, (N2, H2), dtype=jnp.float32)
    bound2 = 1.0 / (H2 ** 0.5)
    wb = jax.random.uniform(k7, (H2, H2), dtype=jnp.float32, minval=-bound2, maxval=bound2)
    bb = jax.random.uniform(k8, (H2,), dtype=jnp.float32, minval=-bound2, maxval=bound2)
    ref2 = highway_ref(x1b, x2b, wb, bb)

    out2 = jax.block_until_ready(highway(x1b, x2b, wb, bb))
    assert out2.shape == (N2, H2)
    assert jnp.allclose(out2, ref2, atol=1e-2, rtol=1e-2)

    # --- explicitly exercise the feature-tiled path (row-outer grid,
    #     in-kernel 128-aligned x1 column slice) ------------------------------
    out3 = jax.block_until_ready(
        highway(x1b, x2b, wb, bb, block_rows=64, block_cols=128))
    assert out3.shape == (N2, H2)
    assert jnp.allclose(out3, ref2, atol=1e-2, rtol=1e-2)

    print("KERNEL_OK")
</pallas_src>

<mosaic_0001>
module attributes {stable_mosaic.version = 11 : i64} {
  func.func @_highway_kernel(%arg0: i32, %arg1: memref<8x32xf32, #tpu.memory_space<vmem>>, %arg2: memref<8x32xf32, #tpu.memory_space<vmem>>, %arg3: memref<32x32xf32, #tpu.memory_space<vmem>>, %arg4: memref<1x32xf32, #tpu.memory_space<vmem>>, %arg5: memref<8x32xf32, #tpu.memory_space<vmem>>) attributes {dimension_semantics = [#tpu.dimension_semantics<parallel>], iteration_bounds = array<i64: 1>, scalar_prefetch = 0 : i64, scratch_operands = 0 : i64, tpu.core_type = #tpu.core_type<tc>, window_params = [{transform_indices = @transform_0, window_bounds = array<i64: 8, 32>}, {transform_indices = @transform_1, window_bounds = array<i64: 8, 32>}, {pipeline_mode = #tpu.pipeline_mode<synchronous>, transform_indices = @transform_2, window_bounds = array<i64: 32, 32>}, {pipeline_mode = #tpu.pipeline_mode<synchronous>, transform_indices = @transform_3, window_bounds = array<i64: 1, 32>}, {transform_indices = @transform_4, window_bounds = array<i64: 8, 32>}]} {
    %c0 = arith.constant 0 : index
    %c0_0 = arith.constant 0 : index
    %0 = vector.load %arg1[%c0, %c0_0] : memref<8x32xf32, #tpu.memory_space<vmem>>, vector<8x32xf32>
    %c0_1 = arith.constant 0 : index
    %c0_2 = arith.constant 0 : index
    %1 = vector.load %arg3[%c0_1, %c0_2] : memref<32x32xf32, #tpu.memory_space<vmem>>, vector<32x32xf32>
    %cst = arith.constant dense<0.000000e+00> : vector<8x32xf32>
    %2 = tpu.matmul %0, %1, %cst {dimension_numbers = #tpu.dot_dimension_numbers<[1], [0], [0], [1], [0, 0, 1, 1], [], []>} : vector<8x32xf32>, vector<32x32xf32>, vector<8x32xf32> -> vector<8x32xf32>
    %c0_3 = arith.constant 0 : index
    %c0_4 = arith.constant 0 : index
    %3 = vector.load %arg4[%c0_3, %c0_4] : memref<1x32xf32, #tpu.memory_space<vmem>>, vector<1x32xf32>
    %4 = vector.broadcast %3 : vector<1x32xf32> to vector<8x32xf32>
    %5 = arith.addf %2, %4 : vector<8x32xf32>
    %6 = arith.negf %5 : vector<8x32xf32>
    %7 = math.exp %6 : vector<8x32xf32>
    %cst_5 = arith.constant 1.000000e+00 : f32
    %8 = vector.broadcast %cst_5 : f32 to vector<8x32xf32>
    %9 = arith.addf %8, %7 : vector<8x32xf32>
    %10 = arith.divf %8, %9 : vector<8x32xf32>
    %c0_6 = arith.constant 0 : index
    %c0_7 = arith.constant 0 : index
    %11 = vector.load %arg1[%c0_6, %c0_7] : memref<8x32xf32, #tpu.memory_space<vmem>>, vector<8x32xf32>
    %c0_8 = arith.constant 0 : index
    %c0_9 = arith.constant 0 : index
    %12 = vector.load %arg2[%c0_8, %c0_9] : memref<8x32xf32, #tpu.memory_space<vmem>>, vector<8x32xf32>
    %13 = arith.subf %12, %11 : vector<8x32xf32>
    %14 = arith.mulf %10, %13 : vector<8x32xf32>
    %15 = arith.addf %11, %14 : vector<8x32xf32>
    %c0_10 = arith.constant 0 : index
    %c0_11 = arith.constant 0 : index
    %16 = vector.load %arg5[%c0_10, %c0_11] : memref<8x32xf32, #tpu.memory_space<vmem>>, vector<8x32xf32>
    tpu.vector_store %arg5[%c0_10, %c0_11], %15 {strides = array<i32>} : memref<8x32xf32, #tpu.memory_space<vmem>>, vector<8x32xf32>,
    return
  }
  func.func @transform_0(%arg0: i32) -> (i32, i32) {
    %c0_i32 = arith.constant 0 : i32
    %c0_i32_0 = arith.constant 0 : i32
    return %arg0, %c0_i32 : i32, i32
  }
  func.func @transform_1(%arg0: i32) -> (i32, i32) {
    %c0_i32 = arith.constant 0 : i32
    %c0_i32_0 = arith.constant 0 : i32
    return %arg0, %c0_i32 : i32, i32
  }
  func.func @transform_2(%arg0: i32) -> (i32, i32) {
    %c0_i32 = arith.constant 0 : i32
    %c0_i32_0 = arith.constant 0 : i32
    %c0_i32_1 = arith.constant 0 : i32
    return %c0_i32, %c0_i32_0 : i32, i32
  }
  func.func @transform_3(%arg0: i32) -> (i32, i32) {
    %c0_i32 = arith.constant 0 : i32
    %c0_i32_0 = arith.constant 0 : i32
    %c0_i32_1 = arith.constant 0 : i32
    return %c0_i32, %c0_i32_0 : i32, i32
  }
  func.func @transform_4(%arg0: i32) -> (i32, i32) {
    %c0_i32 = arith.constant 0 : i32
    %c0_i32_0 = arith.constant 0 : i32
    return %arg0, %c0_i32 : i32, i32
  }
}

</mosaic_0001>

<llo_original>
// kernel: tpu_custom_call.1
$region0: #{tpu_custom_call.1}
  #allocation0 [shape = 'u32[]', space=smem, size = 0x4, offset = 0x4, fixed_abs, tag = 'smem constant byte address 0x4 - core index']
  #allocation1 [shape = 'u32[144,128]{1,0:T(1,128)}', space=vmem, size = 0x12000, scoped, tag = 'internal scratch']
  %s0 = inlined_call_operand.hbm [shape: f32[8,32], index: 0, kind: input, shape index: {}]
  %s1 = inlined_call_operand.hbm [shape: f32[8,32], index: 1, kind: input, shape index: {}]
  %s2 = inlined_call_operand.hbm [shape: f32[32,32], index: 2, kind: input, shape index: {}]
  %s3 = inlined_call_operand.vmem [shape: f32[1,32], index: 3, kind: input, shape index: {}]
  %s4 = inlined_call_operand.hbm [shape: f32[8,32], index: 4, kind: output, shape index: {}]
  %s5 = sld [smem:[#allocation0]]
  $region38: #{tpu_custom_call.1} parent=0
    _
  %s7 = ssub.s32 1, %s5
  %s8 = scalar_select 0, %s7, %s5
  $region1: #{tpu_custom_call.1} parent=0
    #allocation2 [shape = 'u8[4096]{0}', space=vmem, size = 0x1000, scoped, tag = 'input window, operand 0, single buffered']
    #allocation3 [shape = 's32[1]{0}', space=sflag, size = 0x4, scoped, tag = 'scoped memory for tpu_custom_call.1']
    #allocation4 [shape = 's32[1]{0}', space=sflag, size = 0x4, scoped, tag = 'scoped memory for tpu_custom_call.1']
    #allocation5 [shape = 'u8[4096]{0}', space=vmem, size = 0x1000, scoped, tag = 'input window, operand 1, single buffered']
    #allocation6 [shape = 's32[1]{0}', space=sflag, size = 0x4, scoped, tag = 'scoped memory for tpu_custom_call.1']
    #allocation7 [shape = 'u8[16384]{0}', space=vmem, size = 0x4000, scoped, tag = 'input window, operand 2, single buffered']
    #allocation8 [shape = 'u8[4096]{0}', space=vmem, size = 0x1000, scoped, tag = 'output window, operand 0, single buffered']
    %9 = vsyncpa [#allocation3], 0
    %10 = vsyncpa [#allocation6], 0
    %11 = vsyncpa [#allocation4], 0
    // Predicated region
    $region2: #{tpu_custom_call.1} parent=1 // pred_check
      _
    $region3: #{tpu_custom_call.1} parent=1 // pred_check_branch
      %13 = sbr.rel (0) target = $region5
    $region4: #{tpu_custom_call.1} parent=1 // pred_region
      %s15 = ssub.s32 128, 128
      %16 = vsyncadd [#allocation3], %s15
      %s18 = sshll.u32 [#allocation2], 4
      %s19 = int_to_ptr.vmem [resolvable:$true] %s18
      %21 = dma.hbm_to_vmem [thread:$0]  %s0, 128, %s19, [#allocation3]
    $region5: #{tpu_custom_call.1} parent=1 // pred_fallthru
      _
    // Predicated region
    $region6: #{tpu_custom_call.1} parent=1 // pred_check
      _
    $region7: #{tpu_custom_call.1} parent=1 // pred_check_branch
      %23 = sbr.rel (0) target = $region9
    $region8: #{tpu_custom_call.1} parent=1 // pred_region
      %s25 = ssub.s32 128, 128
      %26 = vsyncadd [#allocation6], %s25
      %s28 = sshll.u32 [#allocation5], 4
      %s29 = int_to_ptr.vmem [resolvable:$true] %s28
      %31 = dma.hbm_to_vmem [thread:$0]  %s1, 128, %s29, [#allocation6]
    $region9: #{tpu_custom_call.1} parent=1 // pred_fallthru
      _
    // Predicated region
    $region10: #{tpu_custom_call.1} parent=1 // pred_check
      _
    $region11: #{tpu_custom_call.1} parent=1 // pred_check_branch
      %33 = sbr.rel (0) target = $region13
    $region12: #{tpu_custom_call.1} parent=1 // pred_region
      %s35 = ssub.s32 512, 512
      %36 = vsyncadd [#allocation6], %s35
      %s37 = sshll.u32 [#allocation7], 4
      %s38 = int_to_ptr.vmem [resolvable:$true] %s37
      %43 = dma.hbm_to_vmem [thread:$0]  %s2, 512, %s38, [#allocation6], 128, 128, 8
    $region13: #{tpu_custom_call.1} parent=1 // pred_fallthru
      _
    // Predicated region
    $region14: #{tpu_custom_call.1} parent=1 // pred_check
      _
    $region15: #{tpu_custom_call.1} parent=1 // pred_check_branch
      %45 = sbr.rel (0) target = $region17
    $region16: #{tpu_custom_call.1} parent=1 // pred_region
      _
    $region17: #{tpu_custom_call.1} parent=1 // pred_fallthru
      _
    // Predicated region
    $region18: #{tpu_custom_call.1} parent=1 // pred_check
      _
    $region19: #{tpu_custom_call.1} parent=1 // pred_check_branch
      %47 = sbr.rel (0) target = $region21
    $region20: #{tpu_custom_call.1} parent=1 // pred_region
      %48 = dma.done [#allocation3], 128
    $region21: #{tpu_custom_call.1} parent=1 // pred_fallthru
      _
    // Predicated region
    $region22: #{tpu_custom_call.1} parent=1 // pred_check
      _
    $region23: #{tpu_custom_call.1} parent=1 // pred_check_branch
      %50 = sbr.rel (0) target = $region25
    $region24: #{tpu_custom_call.1} parent=1 // pred_region
      %51 = dma.done [#allocation6], 128
    $region25: #{tpu_custom_call.1} parent=1 // pred_fallthru
      _
    // Predicated region
    $region26: #{tpu_custom_call.1} parent=1 // pred_check
      _
    $region27: #{tpu_custom_call.1} parent=1 // pred_check_branch
      %53 = sbr.rel (0) target = $region29
    $region28: #{tpu_custom_call.1} parent=1 // pred_region
      %54 = dma.done [#allocation6], 512
    $region29: #{tpu_custom_call.1} parent=1 // pred_fallthru
      _
    %v55 = vld [vmem:[#allocation2] sm:$0xff]
    %v56 = vld [vmem:[#allocation7] sm:$0xff]
    %v57 = vld [vmem:[#allocation7 + $0x8] sm:$0xff]
    %v58 = vld [vmem:[#allocation7 + $0x10] sm:$0xff]
    %v59 = vld [vmem:[#allocation7 + $0x18] sm:$0xff]
    %v60 = vld [vmem:[%s3] sm:$0x1]
    %v62 = vlaneseq
    %v63 = vshrl.u32 %v62, 7
    %v64 = vsub.s32 0, %v63
    %v65 = vrot.slane %v60, %v64
    %vm67 = vcmask 261120
    %v69 = vsel %vm67, %v55, 0
    %71 = vmatprep.subr.mxu0 0.0
    %72 = vmatpush1.msra.mxu0 0.0
    %73 = vmatprep.subr.mxu0 0.0
    %74 = vmatpush1.msra.mxu0 0.0
    %75 = vmatprep.subr.mxu0 0.0
    %76 = vmatpush1.msra.mxu0 0.0
    %77 = vmatprep.subr.mxu0 0.0
    %78 = vmatpush1.msra.mxu0 0.0
    %79 = vmatprep.subr.mxu0 0.0
    %80 = vmatpush1.msra.mxu0 0.0
    %81 = vmatprep.subr.mxu0 0.0
    %82 = vmatpush1.msra.mxu0 0.0
    %83 = vmatprep.subr.mxu0 0.0
    %84 = vmatpush1.msra.mxu0 0.0
    %85 = vmatprep.subr.mxu0 0.0
    %86 = vmatpush1.msra.mxu0 0.0
    %87 = vmatprep.subr.mxu0 0.0
    %88 = vmatpush1.msra.mxu0 0.0
    %89 = vmatprep.subr.mxu0 0.0
    %90 = vmatpush1.msra.mxu0 0.0
    %91 = vmatprep.subr.mxu0 0.0
    %92 = vmatpush1.msra.mxu0 0.0
    %93 = vmatprep.subr.mxu0 0.0
    %94 = vmatpush1.msra.mxu0 0.0
    %95 = vmatprep.subr.mxu0 0.0
    %96 = vmatpush1.msra.mxu0 %v59
    %97 = vmatprep.subr.mxu0 0.0
    %98 = vmatpush1.msra.mxu0 %v58
    %99 = vmatprep.subr.mxu0 0.0
    %100 = vmatpush1.msra.mxu0 %v57
    %101 = vmatprep.subr.mxu0 0.0
    %102 = vmatpush1.msra.mxu0 %v56
    %103 = vmatprep.subr.mxu0 0.0
    %104 = vmatpush2.msra.mxu0 0.0
    %105 = vmatprep.subr.mxu0 0.0
    %106 = vmatpush2.msra.mxu0 0.0
    %107 = vmatprep.subr.mxu0 0.0
    %108 = vmatpush2.msra.mxu0 0.0
    %109 = vmatprep.subr.mxu0 0.0
    %110 = vmatpush2.msra.mxu0 0.0
    %111 = vmatprep.subr.mxu0 0.0
    %112 = vmatpush2.msra.mxu0 0.0
    %113 = vmatprep.subr.mxu0 0.0
    %114 = vmatpush2.msra.mxu0 0.0
    %115 = vmatprep.subr.mxu0 0.0
    %116 = vmatpush2.msra.mxu0 0.0
    %117 = vmatprep.subr.mxu0 0.0
    %118 = vmatpush2.msra.mxu0 0.0
    %119 = vmatprep.subr.mxu0 0.0
    %120 = vmatpush2.msra.mxu0 0.0
    %121 = vmatprep.subr.mxu0 0.0
    %122 = vmatpush2.msra.mxu0 0.0
    %123 = vmatprep.subr.mxu0 0.0
    %124 = vmatpush2.msra.mxu0 0.0
    %125 = vmatprep.subr.mxu0 0.0
    %126 = vmatpush2.msra.mxu0 0.0
    %127 = vmatprep.subr.mxu0 0.0
    %128 = vmatpush2.msra.mxu0 0.0
    %129 = vmatprep.subr.mxu0 0.0
    %130 = vmatpush2.msra.mxu0 0.0
    %131 = vmatprep.subr.mxu0 0.0
    %132 = vmatpush2.msra.mxu0 0.0
    %133 = vmatprep.subr.mxu0 0.0
    %134 = vmatpush2.msra.mxu0 0.0
    %135 = vmatprep.mubr.f32.mxu0 0.0
    %136 = vmatmul.mubr.f32.gmra.mxu0 %v69
    %v137 = vpop.f32.mrf.mxu0
    %v138 = vadd.f32 %v65, %v137
    %v139 = vpop.f32.mrf.mxu0
    %140 = vdwg.mxu0
    %v141 = vxor.u32 %v138, 2147483648
    %v142 = vmul.f32 %v141, 1.442695
    %v143 = vpow.pop %v142
    %v144 = vadd.f32 %v143, 1.0
    %v145 = vrcp.pop %v144
    %v146 = vmul.f32 1.0, %v145
    %v147 = vld [vmem:[#allocation5] sm:$0xff]
    %v148 = vsub.f32 %v147, %v55
    %v149 = vmul.f32 %v146, %v148
    %v150 = vadd.f32 %v55, %v149
    %151 = vst.msk [vmem:[#allocation8] sm:$0xff] %vm67, %v150
    // Predicated region
    $region30: #{tpu_custom_call.1} parent=1 // pred_check
      _
    $region31: #{tpu_custom_call.1} parent=1 // pred_check_branch
      %153 = sbr.rel (0) target = $region33
    $region32: #{tpu_custom_call.1} parent=1 // pred_region
      %s155 = ssub.s32 128, 128
      %156 = vsyncadd [#allocation4], %s155
      %s158 = sshll.u32 [#allocation8], 4
      %s159 = int_to_ptr.vmem [resolvable:$true] %s158
      %161 = dma.vmem_to_hbm [thread:$0]  %s159, 128, %s4, [#allocation4]
    $region33: #{tpu_custom_call.1} parent=1 // pred_fallthru
      _
    // Predicated region
    $region34: #{tpu_custom_call.1} parent=1 // pred_check
      _
    $region35: #{tpu_custom_call.1} parent=1 // pred_check_branch
      %163 = sbr.rel (0) target = $region37
    $region36: #{tpu_custom_call.1} parent=1 // pred_region
      %164 = dma.done [#allocation4], 128
    $region37: #{tpu_custom_call.1} parent=1 // pred_fallthru
      _
    %165 = vsyncpa [#allocation3], 1
    %166 = vsyncpa [#allocation6], 1
    %167 = vsyncpa [#allocation4], 1

</llo_original>
